<compile_context>
chip_gen: v7x
topology: tpu7x:2x2x1
jax: 0.10.0
libtpu: 0.0.40
codegen_flags: <defaults>
</compile_context>

<pallas_src>
import math
from typing import NamedTuple, Optional

import jax
import jax.numpy as jnp
from jax.experimental import pallas as pl
from jax.experimental.pallas import tpu as pltpu

_SUBLANE = 8
_LANE = 128
# N/K tile rounding: 256 is native for v6e/v7x MXU and a clean multiple of
# v5e's 128-wide MXU, so a single constant stays portable.
_NK_MULT = 256


def _round_up(x, m):
    return (x + m - 1) // m * m


def _vmem_capacity_bytes():
    try:
        return int(pltpu.get_tpu_info().vmem_capacity_bytes)
    except Exception:
        return 64 << 20  # conservative: v7x per-TensorCore VMEM


# --------------------------------------------------------------------------- #
# Kernels: one (tm, tn) output tile, K is the innermost ("arbitrary") grid axis.
# The output block index does not depend on k, so the output tile stays
# resident in VMEM across all K steps.
# NOTE: the "finalize on last K step" pattern below is only correct because K
# is the *innermost* grid axis -- do not reorder the grid in the wrapper.
# --------------------------------------------------------------------------- #
def _linear_relu_kernel_inplace(x_ref, w_ref, b_ref, o_ref):
    """f32 output: accumulate directly into o_ref (no scratch, no final copy)."""
    k = pl.program_id(2)

    @pl.when(k == 0)
    def _():
        o_ref[...] = jnp.zeros_like(o_ref)

    # x_ref: (tm, tk), w_ref: (tk, tn) -- weight was pre-transposed to [K, N],
    # so this is a plain MXU matmul with f32 accumulation.
    o_ref[...] += jnp.dot(x_ref[...], w_ref[...], preferred_element_type=jnp.float32)

    @pl.when(k == pl.num_programs(2) - 1)
    def _():
        o_ref[...] = jnp.maximum(o_ref[...] + b_ref[...], 0.0)


def _linear_relu_kernel_acc(x_ref, w_ref, b_ref, o_ref, acc_ref):
    """Non-f32 output: keep an f32 VMEM accumulator, cast on the last K step."""
    k = pl.program_id(2)

    @pl.when(k == 0)
    def _():
        acc_ref[...] = jnp.zeros_like(acc_ref)

    acc_ref[...] += jnp.dot(x_ref[...], w_ref[...], preferred_element_type=jnp.float32)

    @pl.when(k == pl.num_programs(2) - 1)
    def _():
        o_ref[...] = jnp.maximum(acc_ref[...] + b_ref[...], 0.0).astype(o_ref.dtype)


# --------------------------------------------------------------------------- #
# One-time parameter preparation (do at init, NOT per forward call).
# --------------------------------------------------------------------------- #
class InputLayerParams(NamedTuple):
    w_t: jax.Array      # [k_p, n_p]: padded weight.T (MXU-friendly [K, N] layout)
    b2d: jax.Array      # [1, n_p]:   padded bias, f32
    weight: jax.Array   # original [out, in] weight (tiny-problem fallback)
    bias: jax.Array     # original [out] bias
    in_size: int
    out_size: int
    tn: int             # N tile; n_p % tn == 0
    tk: int             # K tile; k_p % tk == 0


def prepare_input_layer_params(weight, bias, *, tn: int = 1024, tk: int = 512,
                               param_dtype: Optional[jnp.dtype] = None):
    """Pre-transpose + pre-pad the Linear parameters once.

    param_dtype=jnp.bfloat16 streams the weight in bf16 (kernel still
    accumulates in f32); leave None to keep the original precision.
    """
    if tn % _LANE or tk % _LANE:
        raise ValueError("tn and tk must be multiples of 128")
    out_size, in_size = weight.shape

    tn_eff = min(tn, _round_up(out_size, _NK_MULT))
    tk_eff = min(tk, _round_up(in_size, _NK_MULT))
    n_p = _round_up(out_size, tn_eff)
    k_p = _round_up(in_size, tk_eff)

    w_t = weight.T                                   # [K, N]
    if (k_p, n_p) != (in_size, out_size):
        w_t = jnp.pad(w_t, ((0, k_p - in_size), (0, n_p - out_size)))
    if param_dtype is not None:
        w_t = w_t.astype(param_dtype)

    b = bias if n_p == out_size else jnp.pad(bias, (0, n_p - out_size))
    b2d = b.reshape(1, n_p).astype(jnp.float32)
    return InputLayerParams(w_t, b2d, weight, bias, in_size, out_size, tn_eff, tk_eff)


# --------------------------------------------------------------------------- #
# Forward
# --------------------------------------------------------------------------- #
def input_layer_forward(x, params: InputLayerParams, *, tm: int = 1024,
                        force_pallas: bool = False):
    """Pallas equivalent of InputLayer.forward: relu(x @ W.T + b).

    x: [..., in_size]; returns [..., out_size] in x's dtype.
    """
    in_size, out_size = params.in_size, params.out_size
    assert x.shape[-1] == in_size, "last dim of x must equal input_size"
    lead_shape = x.shape[:-1]
    m = math.prod(lead_shape) if lead_shape else 1
    out_dtype = x.dtype

    # Tiny problems: the pallas_call launch + activation padding dominate;
    # XLA's fused path wins.  Keep the kernel for shapes where it matters.
    if not force_pallas and 2 * m * in_size * out_size < (1 << 22):
        y = jnp.maximum(x @ params.weight.T + params.bias, 0.0)
        return y.astype(out_dtype)

    x2d = x.reshape(m, in_size)
    # Kernel compute dtype follows the prepared weight (e.g. bf16 streaming).
    if x2d.dtype != params.w_t.dtype:
        x2d = x2d.astype(params.w_t.dtype)

    tn, tk = params.tn, params.tk
    k_p, n_p = params.w_t.shape
    grid_n = n_p // tn

    # Sublane multiple for the M tile (8 for f32, 16 for bf16, ...).
    sub = max(_SUBLANE, 32 // x2d.dtype.itemsize)
    tm_eff = min(tm, _round_up(m, sub))

    # v7x has 2 TensorCores sharding the "parallel" grid axes; if the whole
    # problem fits one (i, j) tile, split M so both cores get work.
    if ((m + tm_eff - 1) // tm_eff) * grid_n == 1 and tm_eff % (2 * sub) == 0 and m > sub:
        tm_eff //= 2

    # Keep tiles within ~60% of this generation's VMEM (v7x 64 MiB vs
    # v5e/v6e 128 MiB) so one code path is portable across chips.
    cap = max(_vmem_capacity_bytes(), 32 << 20)
    xb = x2d.dtype.itemsize
    wb = params.w_t.dtype.itemsize
    ob = jnp.dtype(out_dtype).itemsize
    use_acc = out_dtype != jnp.float32

    def vmem_est(tm_):
        dbl = 2 * (tm_ * tk * xb + tk * tn * wb + tn * 4 + tm_ * tn * ob)
        return dbl + (tm_ * tn * 4 if use_acc else 0)

    while vmem_est(tm_eff) > int(0.6 * cap) and tm_eff % (2 * sub) == 0 and tm_eff > 2 * sub:
        tm_eff //= 2

    m_p = _round_up(m, tm_eff)
    if (m_p, k_p) != (m, in_size):
        x2d = jnp.pad(x2d, ((0, m_p - m), (0, k_p - in_size)))  # exact: zero pad

    grid = (m_p // tm_eff, grid_n, k_p // tk)   # K MUST stay innermost (finalize)
    grid_m = grid[0]

    vmem_limit = vmem_est(tm_eff) + (8 << 20)
    vmem_limit = max(16 << 20, min(vmem_limit, cap - (4 << 20)))

    # Truthful HBM traffic: operands are re-streamed across the opposing
    # parallel tile axis.
    cost = pl.CostEstimate(
        flops=2 * m_p * k_p * n_p,
        transcendentals=0,
        bytes_accessed=(m_p * k_p * xb) * grid_n
        + (k_p * n_p * wb) * grid_m
        + (n_p * 4) * grid_m
        + m_p * n_p * ob,
    )

    in_specs = [
        pl.BlockSpec((tm_eff, tk), lambda i, j, k: (i, k)),  # x tile   [M, K]
        pl.BlockSpec((tk, tn), lambda i, j, k: (k, j)),      # W tile   [K, N] (pre-transposed)
        pl.BlockSpec((1, tn), lambda i, j, k: (0, j)),       # bias tile
        # NOTE: if weight-stream bound (small M), pipeline_mode=pl.Buffered(3)
        # on the W spec is a cheap knob to sweep.
    ]
    out_spec = pl.BlockSpec((tm_eff, tn), lambda i, j, k: (i, j))

    if use_acc:
        kernel = _linear_relu_kernel_acc
        scratch = [pltpu.VMEM((tm_eff, tn), jnp.float32)]
    else:
        kernel = _linear_relu_kernel_inplace
        scratch = []

    out = pl.pallas_call(
        kernel,
        out_shape=jax.ShapeDtypeStruct((m_p, n_p), out_dtype),
        grid_spec=pltpu.PrefetchScalarGridSpec(
            num_scalar_prefetch=0,
            grid=grid,
            in_specs=in_specs,
            out_specs=out_spec,
            scratch_shapes=scratch,
        ),
        compiler_params=pltpu.CompilerParams(
            dimension_semantics=("parallel", "parallel", "arbitrary"),
            vmem_limit_bytes=int(vmem_limit),
        ),
        cost_estimate=cost,
    )(x2d, params.w_t, params.b2d)

    out = out[:m, :out_size]
    return out.reshape(*lead_shape, out_size)


if __name__ == "__main__":
    # Module config (small, consistent with nn.Linear(input_size, output_size))
    input_size = 32
    output_size = 64
    batch, seq = 2, 8

    key = jax.random.PRNGKey(0)
    kx, kw, kb = jax.random.split(key, 3)

    # Deterministic synthetic parameters (PyTorch-style uniform init bound)
    bound = 1.0 / math.sqrt(input_size)
    weight = jax.random.uniform(kw, (output_size, input_size), jnp.float32, -bound, bound)
    bias = jax.random.uniform(kb, (output_size,), jnp.float32, -bound, bound)
    x = jax.random.normal(kx, (batch, seq, input_size), jnp.float32)

    # One-time parameter prep (pre-transpose + pre-pad; no per-call weight pad).
    params = prepare_input_layer_params(weight, bias)

    # Force the Pallas path even though this example is tiny, so the kernel runs.
    y = input_layer_forward(x, params, force_pallas=True)
    jax.block_until_ready(y)

    y_ref = jnp.maximum(jnp.einsum("bsk,nk->bsn", x, weight) + bias, 0.0)
    assert y.shape == (batch, seq, output_size)
    assert jnp.allclose(y, y_ref, atol=1e-5, rtol=1e-5)

    # Default path: tiny-problem fallback must match too.
    y_auto = input_layer_forward(x, params)
    assert jnp.allclose(y_auto, y_ref, atol=1e-5, rtol=1e-5)

    # bf16-streamed weights (f32 accumulation in-kernel), looser tolerance.
    params_bf16 = prepare_input_layer_params(weight, bias, param_dtype=jnp.bfloat16)
    y_bf16 = input_layer_forward(x, params_bf16, force_pallas=True)
    jax.block_until_ready(y_bf16)
    assert jnp.allclose(y_bf16, y_ref, atol=5e-2, rtol=5e-2)

    print("KERNEL_OK")
</pallas_src>

<mosaic_0001>
module attributes {stable_mosaic.version = 11 : i64} {
  func.func @_linear_relu_kernel_inplace(%arg0: i32, %arg1: i32, %arg2: i32, %arg3: memref<8x256xf32, #tpu.memory_space<vmem>>, %arg4: memref<256x256xf32, #tpu.memory_space<vmem>>, %arg5: memref<1x256xf32, #tpu.memory_space<vmem>>, %arg6: memref<8x256xf32, #tpu.memory_space<vmem>>) attributes {dimension_semantics = [#tpu.dimension_semantics<parallel>, #tpu.dimension_semantics<parallel>, #tpu.dimension_semantics<arbitrary>], iteration_bounds = array<i64: 2, 1, 1>, scalar_prefetch = 0 : i64, scratch_operands = 0 : i64, tpu.core_type = #tpu.core_type<tc>, window_params = [{transform_indices = @transform_0, window_bounds = array<i64: 8, 256>}, {transform_indices = @transform_1, window_bounds = array<i64: 256, 256>}, {transform_indices = @transform_2, window_bounds = array<i64: 1, 256>}, {transform_indices = @transform_3, window_bounds = array<i64: 8, 256>}]} {
    %c0_i32 = arith.constant 0 : i32
    %0 = arith.cmpi eq, %arg2, %c0_i32 : i32
    %1 = arith.extui %0 : i1 to i32
    %c0_i32_0 = arith.constant 0 : i32
    %2 = arith.cmpi ne, %1, %c0_i32_0 : i32
    scf.if %2 {
      %cst_10 = arith.constant 0.000000e+00 : f32
      %12 = vector.broadcast %cst_10 : f32 to vector<8x256xf32>
      %c0_11 = arith.constant 0 : index
      %c0_12 = arith.constant 0 : index
      %13 = vector.load %arg6[%c0_11, %c0_12] : memref<8x256xf32, #tpu.memory_space<vmem>>, vector<8x256xf32>
      tpu.vector_store %arg6[%c0_11, %c0_12], %12 {strides = array<i32>} : memref<8x256xf32, #tpu.memory_space<vmem>>, vector<8x256xf32>,
    } else {
    }
    %c0 = arith.constant 0 : index
    %c0_1 = arith.constant 0 : index
    %3 = vector.load %arg6[%c0, %c0_1] : memref<8x256xf32, #tpu.memory_space<vmem>>, vector<8x256xf32>
    %c0_2 = arith.constant 0 : index
    %c0_3 = arith.constant 0 : index
    %4 = vector.load %arg3[%c0_2, %c0_3] : memref<8x256xf32, #tpu.memory_space<vmem>>, vector<8x256xf32>
    %c0_4 = arith.constant 0 : index
    %c0_5 = arith.constant 0 : index
    %5 = vector.load %arg4[%c0_4, %c0_5] : memref<256x256xf32, #tpu.memory_space<vmem>>, vector<256x256xf32>
    %cst = arith.constant dense<0.000000e+00> : vector<8x256xf32>
    %6 = tpu.matmul %4, %5, %cst {dimension_numbers = #tpu.dot_dimension_numbers<[1], [0], [0], [1], [0, 0, 1, 1], [], []>} : vector<8x256xf32>, vector<256x256xf32>, vector<8x256xf32> -> vector<8x256xf32>
    %7 = arith.addf %3, %6 : vector<8x256xf32>
    %c0_6 = arith.constant 0 : index
    %c0_7 = arith.constant 0 : index
    %8 = vector.load %arg6[%c0_6, %c0_7] : memref<8x256xf32, #tpu.memory_space<vmem>>, vector<8x256xf32>
    tpu.vector_store %arg6[%c0_6, %c0_7], %7 {strides = array<i32>} : memref<8x256xf32, #tpu.memory_space<vmem>>, vector<8x256xf32>,
    %c0_i32_8 = arith.constant 0 : i32
    %9 = arith.cmpi eq, %arg2, %c0_i32_8 : i32
    %10 = arith.extui %9 : i1 to i32
    %c0_i32_9 = arith.constant 0 : i32
    %11 = arith.cmpi ne, %10, %c0_i32_9 : i32
    scf.if %11 {
      %c0_10 = arith.constant 0 : index
      %c0_11 = arith.constant 0 : index
      %12 = vector.load %arg6[%c0_10, %c0_11] : memref<8x256xf32, #tpu.memory_space<vmem>>, vector<8x256xf32>
      %c0_12 = arith.constant 0 : index
      %c0_13 = arith.constant 0 : index
      %13 = vector.load %arg5[%c0_12, %c0_13] : memref<1x256xf32, #tpu.memory_space<vmem>>, vector<1x256xf32>
      %14 = vector.broadcast %13 : vector<1x256xf32> to vector<8x256xf32>
      %15 = arith.addf %12, %14 : vector<8x256xf32>
      %cst_14 = arith.constant 0.000000e+00 : f32
      %16 = vector.broadcast %cst_14 : f32 to vector<8x256xf32>
      %17 = arith.maximumf %15, %16 : vector<8x256xf32>
      %c0_15 = arith.constant 0 : index
      %c0_16 = arith.constant 0 : index
      %18 = vector.load %arg6[%c0_15, %c0_16] : memref<8x256xf32, #tpu.memory_space<vmem>>, vector<8x256xf32>
      tpu.vector_store %arg6[%c0_15, %c0_16], %17 {strides = array<i32>} : memref<8x256xf32, #tpu.memory_space<vmem>>, vector<8x256xf32>,
    } else {
    }
    return
  }
  func.func @transform_0(%arg0: i32, %arg1: i32, %arg2: i32) -> (i32, i32) {
    %c0_i32 = arith.constant 0 : i32
    return %arg0, %arg2 : i32, i32
  }
  func.func @transform_1(%arg0: i32, %arg1: i32, %arg2: i32) -> (i32, i32) {
    %c0_i32 = arith.constant 0 : i32
    return %arg2, %arg1 : i32, i32
  }
  func.func @transform_2(%arg0: i32, %arg1: i32, %arg2: i32) -> (i32, i32) {
    %c0_i32 = arith.constant 0 : i32
    %c0_i32_0 = arith.constant 0 : i32
    return %c0_i32, %arg1 : i32, i32
  }
  func.func @transform_3(%arg0: i32, %arg1: i32, %arg2: i32) -> (i32, i32) {
    %c0_i32 = arith.constant 0 : i32
    return %arg0, %arg1 : i32, i32
  }
}

</mosaic_0001>

<llo_original>
// kernel: tpu_custom_call.1
$region0: #{tpu_custom_call.1}
  #allocation0 [shape = 'u32[]', space=smem, size = 0x4, offset = 0x4, fixed_abs, tag = 'smem constant byte address 0x4 - core index']
  #allocation1 [shape = 'u32[144,128]{1,0:T(1,128)}', space=vmem, size = 0x12000, scoped, tag = 'internal scratch']
  %s0 = inlined_call_operand.hbm [shape: f32[16,256], index: 0, kind: input, shape index: {}]
  %s1 = inlined_call_operand.hbm [shape: f32[256,256], index: 1, kind: input, shape index: {}]
  %s2 = inlined_call_operand.vmem [shape: f32[1,256], index: 2, kind: input, shape index: {}]
  %s3 = inlined_call_operand.hbm [shape: f32[16,256], index: 3, kind: output, shape index: {}]
  %s4 = sld [smem:[#allocation0]]
  $region61: #{tpu_custom_call.1} parent=0
    _
  %s6 = ssub.s32 1, %s4
  %s7 = scalar_select 0, %s6, %s4
  $region1: #{tpu_custom_call.1} parent=0
    #allocation2 [shape = 'u8[16384]{0}', space=vmem, size = 0x4000, scoped, tag = 'input window, operand 0']
    #allocation3 [shape = 's32[2]{0}', space=sflag, size = 0x8, scoped, tag = 'scoped memory for tpu_custom_call.1']
    #allocation4 [shape = 's32[2]{0}', space=sflag, size = 0x8, scoped, tag = 'scoped memory for tpu_custom_call.1']
    #allocation5 [shape = 'u8[262144]{0}', space=vmem, size = 0x40000, scoped, tag = 'input window, operand 1, single buffered']
    #allocation6 [shape = 's32[1]{0}', space=sflag, size = 0x4, scoped, tag = 'scoped memory for tpu_custom_call.1']
    #allocation7 [shape = 'u8[16384]{0}', space=vmem, size = 0x4000, scoped, tag = 'output window, operand 0']
    %8 = vsyncpa [#allocation3], 0
    %s9 = scalar_lea.sflag [#allocation3], 1
    %10 = vsyncpa %s9, 0
    %11 = vsyncpa [#allocation6], 0
    %12 = vsyncpa [#allocation4], 0
    %s13 = scalar_lea.sflag [#allocation4], 1
    %14 = vsyncpa %s13, 0
    loop: start=0, step=1, limit=4
    $region2: #{tpu_custom_call.1} parent=1 // loop_pre_header
      _
    $region3: #{tpu_custom_call.1} parent=1 // loop_header
      %s16 = sphi 0, %s20
      %p17 = scmp.ge.s32.totalorder %s16, 4
      %s23 = sphi 0, %s42
      %s24 = sphi 0, %s38
      %s25 = sphi 0, %s34
      %s26 = sphi 0, %s23
      %s27 = sphi 0, %s24
      %s28 = sphi 0, %s25
      %s29 = sphi 0, %s26
      %s30 = sphi 0, %s27
      %s31 = sphi 0, %s28
      %s47 = sphi 0, %s49
      %s50 = sphi 0, %s47
      %s51 = sphi 0, %s50
      %s67 = sphi 0, %s51
      %s75 = sphi 0, %s77
      %s78 = sphi 0, %s75
      %s79 = sphi 0, %s78
      %s95 = sphi 0, %s79
      %s101 = sphi 0, %s103
      %s104 = sphi 0, %s101
      %s105 = sphi 0, %s104
      %s121 = sphi 0, %s105
      %s129 = sphi 0, %s131
      %s132 = sphi 0, %s129
      %s133 = sphi 0, %s132
      %s149 = sphi 0, %s133
    $region4: #{tpu_custom_call.1} parent=1 // loop_header_branch
      %19 = sbr.rel (%p17) target = $region8
    $region5: #{tpu_custom_call.1} parent=1 // loop_body
      %s21 = ssub.s32 %s16, 1
      %s22 = ssub.s32 %s16, 2
      %s32 = sadd.s32 1, %s25
      %p33 = scmp.ge.s32.totalorder %s32, 1
      %s34 = scalar_select %p33, 0, %s32
      %s35 = sadd.s32 1, %s24
      %s36 = scalar_select %p33, %s35, %s24
      %p37 = scmp.ge.s32.totalorder %s36, 1
      %s38 = scalar_select %p37, 0, %s36
      %s39 = sadd.s32 1, %s23
      %s40 = scalar_select %p37, %s39, %s23
      %p41 = scmp.ge.s32.totalorder %s40, 2
      %s42 = scalar_select %p41, 0, %s40
      %s43 = ssub.s32 %s23, %s42
      %s44 = ssub.s32 %s25, %s34
      %s45 = sor.u32 %s43, %s44
      %p46 = scmp.eq.s32.totalorder %s45, 0
      %s48 = sadd.s32 %s47, 1
      %s49 = scalar_select %p46, %s47, %s48
      %p52 = pneg %p46
      %p53 = scmp.eq.s32.totalorder %s16, 1
      %p54 = por %p52, %p53
      %p55 = scmp.ne.s32.totalorder %s47, %s50
      %p56 = scmp.eq.s32.totalorder %s16, 0
      %p57 = por %p55, %p56
      %p58 = scmp.ne.s32.totalorder %s47, %s50
      %p59 = scmp.eq.s32.totalorder %s21, 1
      %p60 = por %p58, %p59
      %p61 = scmp.ne.s32.totalorder %s50, %s51
      %p62 = scmp.eq.s32.totalorder %s21, 0
      %p63 = por %p61, %p62
      %p64 = scmp.ne.s32.totalorder %s50, %s51
      %p65 = scmp.eq.s32.totalorder %s22, 1
      %p66 = por %p64, %p65
      %p68 = scmp.ne.s32.totalorder %s51, %s67
      %p69 = scmp.eq.s32.totalorder %s22, 0
      %p70 = por %p68, %p69
      %s71 = ssub.s32 %s25, %s34
      %s72 = ssub.s32 %s24, %s38
      %s73 = sor.u32 %s71, %s72
      %p74 = scmp.eq.s32.totalorder %s73, 0
      %s76 = sadd.s32 %s75, 1
      %s77 = scalar_select %p74, %s75, %s76
      %p80 = pneg %p74
      %p81 = scmp.eq.s32.totalorder %s16, 1
      %p82 = por %p80, %p81
      %p83 = scmp.ne.s32.totalorder %s75, %s78
      %p84 = scmp.eq.s32.totalorder %s16, 0
      %p85 = por %p83, %p84
      %p86 = scmp.ne.s32.totalorder %s75, %s78
      %p87 = scmp.eq.s32.totalorder %s21, 1
      %p88 = por %p86, %p87
      %p89 = scmp.ne.s32.totalorder %s78, %s79
      %p90 = scmp.eq.s32.totalorder %s21, 0
      %p91 = por %p89, %p90
      %p92 = scmp.ne.s32.totalorder %s78, %s79
      %p93 = scmp.eq.s32.totalorder %s22, 1
      %p94 = por %p92, %p93
      %p96 = scmp.ne.s32.totalorder %s79, %s95
      %p97 = scmp.eq.s32.totalorder %s22, 0
      %p98 = por %p96, %p97
      %s99 = ssub.s32 %s24, %s38
      %p100 = scmp.eq.s32.totalorder %s99, 0
      %s102 = sadd.s32 %s101, 1
      %s103 = scalar_select %p100, %s101, %s102
      %p106 = pneg %p100
      %p107 = scmp.eq.s32.totalorder %s16, 1
      %p108 = por %p106, %p107
      %p109 = scmp.ne.s32.totalorder %s101, %s104
      %p110 = scmp.eq.s32.totalorder %s16, 0
      %p111 = por %p109, %p110
      %p112 = scmp.ne.s32.totalorder %s101, %s104
      %p113 = scmp.eq.s32.totalorder %s21, 1
      %p114 = por %p112, %p113
      %p115 = scmp.ne.s32.totalorder %s104, %s105
      %p116 = scmp.eq.s32.totalorder %s21, 0
      %p117 = por %p115, %p116
      %p118 = scmp.ne.s32.totalorder %s104, %s105
      %p119 = scmp.eq.s32.totalorder %s22, 1
      %p120 = por %p118, %p119
      %p122 = scmp.ne.s32.totalorder %s105, %s121
      %p123 = scmp.eq.s32.totalorder %s22, 0
      %p124 = por %p122, %p123
      %s125 = ssub.s32 %s23, %s42
      %s126 = ssub.s32 %s24, %s38
      %s127 = sor.u32 %s125, %s126
      %p128 = scmp.eq.s32.totalorder %s127, 0
      %s130 = sadd.s32 %s129, 1
      %s131 = scalar_select %p128, %s129, %s130
      %p134 = pneg %p128
      %p135 = scmp.eq.s32.totalorder %s16, 1
      %p136 = por %p134, %p135
      %p137 = scmp.ne.s32.totalorder %s129, %s132
      %p138 = scmp.eq.s32.totalorder %s16, 0
      %p139 = por %p137, %p138
      %p140 = scmp.ne.s32.totalorder %s129, %s132
      %p141 = scmp.eq.s32.totalorder %s21, 1
      %p142 = por %p140, %p141
      %p143 = scmp.ne.s32.totalorder %s132, %s133
      %p144 = scmp.eq.s32.totalorder %s21, 0
      %p145 = por %p143, %p144
      %p146 = scmp.ne.s32.totalorder %s132, %s133
      %p147 = scmp.eq.s32.totalorder %s22, 1
      %p148 = por %p146, %p147
      %p150 = scmp.ne.s32.totalorder %s133, %s149
      %p151 = scmp.eq.s32.totalorder %s22, 0
      %p152 = por %p150, %p151
      %p153 = scmp.le.s32.totalorder 1, %s16
      %p154 = scmp.lt.s32.totalorder %s16, 3
      %p155 = pnand %p153, %p154
      %p156 = pneg %p155
      // Predicated region
      $region9: #{tpu_custom_call.1} parent=5 // pred_check
        _
      $region10: #{tpu_custom_call.1} parent=5 // pred_check_branch
        %158 = sbr.rel (%p155) target = $region12
      $region11: #{tpu_custom_call.1} parent=5 // pred_region
        %s159 = ssub.s32 %s16, 1
        // Predicated region
        $region13: #{tpu_custom_call.1} parent=11 // pred_check
          %p160 = pneg %p91
        $region14: #{tpu_custom_call.1} parent=11 // pred_check_branch
          %162 = sbr.rel (%p160) target = $region16
        $region15: #{tpu_custom_call.1} parent=11 // pred_region
          %s163 = smul.u32 32, %s28
          %s164 = smul.u32 2, %s27
          %s166 = ssub.s32 8192, 8192
          %167 = vsyncadd [#allocation6], %s166
          %s168 = smul.addr %s163, 2
          %s169 = sadd.s32 %s164, %s168
          %s170 = smul.addr %s169, 128
          %s171 = scalar_lea.hbm %s1, %s170
          %s172 = sshll.u32 [#allocation5], 4
          %s173 = int_to_ptr.vmem [resolvable:$true] %s172
          %178 = dma.hbm_to_vmem [thread:$0]  %s171, 8192, %s173, [#allocation6], 256, 256, 16
        $region16: #{tpu_custom_call.1} parent=11 // pred_fallthru
          _
        // Predicated region
        $region17: #{tpu_custom_call.1} parent=11 // pred_check
          %p179 = pneg %p117
        $region18: #{tpu_custom_call.1} parent=11 // pred_check_branch
          %181 = sbr.rel (%p179) target = $region20
        $region19: #{tpu_custom_call.1} parent=11 // pred_region
          %s182 = smul.u32 2, %s27
          %p183 = scmp.lt.s32.totalorder %s182, 1
          %s184 = scalar_select %p183, %s182, 1
          %s185 = scalar_lea.vmem %s2, %s184
          %s186 = smul.u32 2, %s27
        $region20: #{tpu_custom_call.1} parent=11 // pred_fallthru
          _
      $region12: #{tpu_custom_call.1} parent=5 // pred_fallthru
        _
      %p187 = scmp.lt.s32.totalorder %s16, 2
      // Predicated region
      $region21: #{tpu_custom_call.1} parent=5 // pred_check
        %p188 = pneg %p187
      $region22: #{tpu_custom_call.1} parent=5 // pred_check_branch
        %190 = sbr.rel (%p188) target = $region24
      $region23: #{tpu_custom_call.1} parent=5 // pred_region
        // Predicated region
        $region25: #{tpu_custom_call.1} parent=23 // pred_check
          %p191 = pneg %p57
        $region26: #{tpu_custom_call.1} parent=23 // pred_check_branch
          %193 = sbr.rel (%p191) target = $region28
        $region27: #{tpu_custom_call.1} parent=23 // pred_region
          %s194 = sand.u32 %s47, 1
          %s195 = scalar_lea.sflag [#allocation3], %s194
          %s196 = sand.u32 %s47, 1
          %s197 = smul.addr %s196, 16
          %s198 = scalar_lea.vmem [#allocation2], %s197
          %s199 = smul.u32 2, %s25
          %s201 = ssub.s32 256, 256
          %202 = vsyncadd %s195, %s201
          %s203 = smul.addr %s23, 2
          %s204 = sadd.s32 %s199, %s203
          %s205 = smul.addr %s204, 128
          %s206 = scalar_lea.hbm %s0, %s205
          %s208 = sshll.u32 %s198, 4
          %s209 = int_to_ptr.vmem [resolvable:$true] %s208
          %211 = dma.hbm_to_vmem [thread:$0]  %s206, 256, %s209, %s195
        $region28: #{tpu_custom_call.1} parent=23 // pred_fallthru
          _
      $region24: #{tpu_custom_call.1} parent=5 // pred_fallthru
        _
      %p212 = scmp.le.s32.totalorder 1, %s16
      %p213 = scmp.lt.s32.totalorder %s16, 3
      %p214 = pnand %p212, %p213
      %p215 = pneg %p214
      // Predicated region
      $region29: #{tpu_custom_call.1} parent=5 // pred_check
        _
      $region30: #{tpu_custom_call.1} parent=5 // pred_check_branch
        %217 = sbr.rel (%p214) target = $region32
      $region31: #{tpu_custom_call.1} parent=5 // pred_region
        %s218 = ssub.s32 %s16, 1
        %s219 = sand.u32 %s50, 1
        %s220 = scalar_lea.sflag [#allocation3], %s219
        %s221 = sand.u32 %s50, 1
        %s222 = smul.addr %s221, 16
        %s223 = scalar_lea.vmem [#allocation2], %s222
        // Predicated region
        $region33: #{tpu_custom_call.1} parent=31 // pred_check
          %p224 = pneg %p63
        $region34: #{tpu_custom_call.1} parent=31 // pred_check_branch
          %226 = sbr.rel (%p224) target = $region36
        $region35: #{tpu_custom_call.1} parent=31 // pred_region
          %227 = dma.done %s220, 256
        $region36: #{tpu_custom_call.1} parent=31 // pred_fallthru
          _
        // Predicated region
        $region37: #{tpu_custom_call.1} parent=31 // pred_check
          %p228 = pneg %p91
        $region38: #{tpu_custom_call.1} parent=31 // pred_check_branch
          %230 = sbr.rel (%p228) target = $region40
        $region39: #{tpu_custom_call.1} parent=31 // pred_region
          %231 = dma.done [#allocation6], 8192
        $region40: #{tpu_custom_call.1} parent=31 // pred_fallthru
          _
        %s232 = sand.u32 %s50, 1
        %s233 = scalar_lea.sflag [#allocation3], %s232
        %s234 = sand.u32 %s50, 1
        %s235 = smul.addr %s234, 16
        %s236 = scalar_lea.vmem [#allocation2], %s235
        %p237 = pneg %p63
        %p238 = pneg %p60
        %p239 = pneg %p91
        %p240 = pneg %p88
        %s241 = smul.u32 2, %s27
        %p242 = scmp.lt.s32.totalorder %s241, 1
        %s243 = scalar_select %p242, %s241, 1
        %s244 = scalar_lea.vmem %s2, %s243
        %p245 = pneg %p117
        %p246 = pneg %p114
        %p247 = pneg %p145
        %p248 = pneg %p142
        %s249 = sand.u32 %s132, 1
        %s250 = scalar_lea.sflag [#allocation4], %s249
        %s251 = sand.u32 %s132, 1
        %s252 = smul.addr %s251, 16
        %s253 = scalar_lea.vmem [#allocation7], %s252
        %s254 = smul.u32 2, %s28
        %s255 = smul.u32 32, %s28
        %s256 = smul.u32 2, %s27
        %s257 = smul.u32 2, %s27
        %p258 = scmp.lt.s32.totalorder %s257, 1
        %s259 = scalar_select %p258, %s257, 1
        %s260 = scalar_lea.vmem %s2, %s259
        %s261 = smul.u32 2, %s27
        %s262 = smul.u32 2, %s27
        %p263 = scmp.eq.s32.totalorder %s28, 0
        // Predicated region
        $region41: #{tpu_custom_call.1} parent=31 // pred_check
          %p264 = pneg %p263
        $region42: #{tpu_custom_call.1} parent=31 // pred_check_branch
          %266 = sbr.rel (%p264) target = $region44
        $region43: #{tpu_custom_call.1} parent=31 // pred_region
          %267 = vst [vmem:[%s253] sm:$0xff] 0.0
          %268 = vst [vmem:[%s253 + $0x8] sm:$0xff] 0.0
        $region44: #{tpu_custom_call.1} parent=31 // pred_fallthru
          _
        %v269 = vld [vmem:[%s253] sm:$0xff]
        %v270 = vld [vmem:[%s253 + $0x8] sm:$0xff]
        %v271 = vld [vmem:[%s223] sm:$0xff]
        %v272 = vld [vmem:[%s223 + $0x8] sm:$0xff]
        %v273 = vld [vmem:[#allocation5] sm:$0xff]
        %v274 = vld [vmem:[#allocation5 + $0x8] sm:$0xff]
        %v275 = vld [vmem:[#allocation5 + $0x10] sm:$0xff]
        %v276 = vld [vmem:[#allocation5 + $0x18] sm:$0xff]
        %v277 = vld [vmem:[#allocation5 + $0x20] sm:$0xff]
        %v278 = vld [vmem:[#allocation5 + $0x28] sm:$0xff]
        %v279 = vld [vmem:[#allocation5 + $0x30] sm:$0xff]
        %v280 = vld [vmem:[#allocation5 + $0x38] sm:$0xff]
        %v281 = vld [vmem:[#allocation5 + $0x40] sm:$0xff]
        %v282 = vld [vmem:[#allocation5 + $0x48] sm:$0xff]
        %v283 = vld [vmem:[#allocation5 + $0x50] sm:$0xff]
        %v284 = vld [vmem:[#allocation5 + $0x58] sm:$0xff]
        %v285 = vld [vmem:[#allocation5 + $0x60] sm:$0xff]
        %v286 = vld [vmem:[#allocation5 + $0x68] sm:$0xff]
        %v287 = vld [vmem:[#allocation5 + $0x70] sm:$0xff]
        %v288 = vld [vmem:[#allocation5 + $0x78] sm:$0xff]
        %v289 = vld [vmem:[#allocation5 + $0x80] sm:$0xff]
        %v290 = vld [vmem:[#allocation5 + $0x88] sm:$0xff]
        %v291 = vld [vmem:[#allocation5 + $0x90] sm:$0xff]
        %v292 = vld [vmem:[#allocation5 + $0x98] sm:$0xff]
        %v293 = vld [vmem:[#allocation5 + $0xa0] sm:$0xff]
        %v294 = vld [vmem:[#allocation5 + $0xa8] sm:$0xff]
        %v295 = vld [vmem:[#allocation5 + $0xb0] sm:$0xff]
        %v296 = vld [vmem:[#allocation5 + $0xb8] sm:$0xff]
        %v297 = vld [vmem:[#allocation5 + $0xc0] sm:$0xff]
        %v298 = vld [vmem:[#allocation5 + $0xc8] sm:$0xff]
        %v299 = vld [vmem:[#allocation5 + $0xd0] sm:$0xff]
        %v300 = vld [vmem:[#allocation5 + $0xd8] sm:$0xff]
        %v301 = vld [vmem:[#allocation5 + $0xe0] sm:$0xff]
        %v302 = vld [vmem:[#allocation5 + $0xe8] sm:$0xff]
        %v303 = vld [vmem:[#allocation5 + $0xf0] sm:$0xff]
        %v304 = vld [vmem:[#allocation5 + $0xf8] sm:$0xff]
        %v305 = vld [vmem:[#allocation5 + $0x100] sm:$0xff]
        %v306 = vld [vmem:[#allocation5 + $0x108] sm:$0xff]
        %v307 = vld [vmem:[#allocation5 + $0x110] sm:$0xff]
        %v308 = vld [vmem:[#allocation5 + $0x118] sm:$0xff]
        %v309 = vld [vmem:[#allocation5 + $0x120] sm:$0xff]
        %v310 = vld [vmem:[#allocation5 + $0x128] sm:$0xff]
        %v311 = vld [vmem:[#allocation5 + $0x130] sm:$0xff]
        %v312 = vld [vmem:[#allocation5 + $0x138] sm:$0xff]
        %v313 = vld [vmem:[#allocation5 + $0x140] sm:$0xff]
        %v314 = vld [vmem:[#allocation5 + $0x148] sm:$0xff]
        %v315 = vld [vmem:[#allocation5 + $0x150] sm:$0xff]
        %v316 = vld [vmem:[#allocation5 + $0x158] sm:$0xff]
        %v317 = vld [vmem:[#allocation5 + $0x160] sm:$0xff]
        %v318 = vld [vmem:[#allocation5 + $0x168] sm:$0xff]
        %v319 = vld [vmem:[#allocation5 + $0x170] sm:$0xff]
        %v320 = vld [vmem:[#allocation5 + $0x178] sm:$0xff]
        %v321 = vld [vmem:[#allocation5 + $0x180] sm:$0xff]
        %v322 = vld [vmem:[#allocation5 + $0x188] sm:$0xff]
        %v323 = vld [vmem:[#allocation5 + $0x190] sm:$0xff]
        %v324 = vld [vmem:[#allocation5 + $0x198] sm:$0xff]
        %v325 = vld [vmem:[#allocation5 + $0x1a0] sm:$0xff]
        %v326 = vld [vmem:[#allocation5 + $0x1a8] sm:$0xff]
        %v327 = vld [vmem:[#allocation5 + $0x1b0] sm:$0xff]
        %v328 = vld [vmem:[#allocation5 + $0x1b8] sm:$0xff]
        %v329 = vld [vmem:[#allocation5 + $0x1c0] sm:$0xff]
        %v330 = vld [vmem:[#allocation5 + $0x1c8] sm:$0xff]
        %v331 = vld [vmem:[#allocation5 + $0x1d0] sm:$0xff]
        %v332 = vld [vmem:[#allocation5 + $0x1d8] sm:$0xff]
        %v333 = vld [vmem:[#allocation5 + $0x1e0] sm:$0xff]
        %v334 = vld [vmem:[#allocation5 + $0x1e8] sm:$0xff]
        %v335 = vld [vmem:[#allocation5 + $0x1f0] sm:$0xff]
        %v336 = vld [vmem:[#allocation5 + $0x1f8] sm:$0xff]
        %337 = vmatprep.subr.mxu0 %v274
        %338 = vmatpush1.msra.mxu0 %v273
        %339 = vmatprep.subr.mxu0 %v276
        %340 = vmatpush1.msra.mxu0 %v275
        %341 = vmatprep.subr.mxu0 %v278
        %342 = vmatpush1.msra.mxu0 %v277
        %343 = vmatprep.subr.mxu0 %v280
        %344 = vmatpush1.msra.mxu0 %v279
        %345 = vmatprep.subr.mxu0 %v282
        %346 = vmatpush1.msra.mxu0 %v281
        %347 = vmatprep.subr.mxu0 %v284
        %348 = vmatpush1.msra.mxu0 %v283
        %349 = vmatprep.subr.mxu0 %v286
        %350 = vmatpush1.msra.mxu0 %v285
        %351 = vmatprep.subr.mxu0 %v288
        %352 = vmatpush1.msra.mxu0 %v287
        %353 = vmatprep.subr.mxu0 %v290
        %354 = vmatpush1.msra.mxu0 %v289
        %355 = vmatprep.subr.mxu0 %v292
        %356 = vmatpush1.msra.mxu0 %v291
        %357 = vmatprep.subr.mxu0 %v294
        %358 = vmatpush1.msra.mxu0 %v293
        %359 = vmatprep.subr.mxu0 %v296
        %360 = vmatpush1.msra.mxu0 %v295
        %361 = vmatprep.subr.mxu0 %v298
        %362 = vmatpush1.msra.mxu0 %v297
        %363 = vmatprep.subr.mxu0 %v300
        %364 = vmatpush1.msra.mxu0 %v299
        %365 = vmatprep.subr.mxu0 %v302
        %366 = vmatpush1.msra.mxu0 %v301
        %367 = vmatprep.subr.mxu0 %v304
        %368 = vmatpush1.msra.mxu0 %v303
        %369 = vmatprep.subr.mxu0 %v306
        %370 = vmatpush1.msra.mxu0 %v305
        %371 = vmatprep.subr.mxu0 %v308
        %372 = vmatpush1.msra.mxu0 %v307
        %373 = vmatprep.subr.mxu0 %v310
        %374 = vmatpush1.msra.mxu0 %v309
        %375 = vmatprep.subr.mxu0 %v312
        %376 = vmatpush1.msra.mxu0 %v311
        %377 = vmatprep.subr.mxu0 %v314
        %378 = vmatpush1.msra.mxu0 %v313
        %379 = vmatprep.subr.mxu0 %v316
        %380 = vmatpush1.msra.mxu0 %v315
        %381 = vmatprep.subr.mxu0 %v318
        %382 = vmatpush1.msra.mxu0 %v317
        %383 = vmatprep.subr.mxu0 %v320
        %384 = vmatpush1.msra.mxu0 %v319
        %385 = vmatprep.subr.mxu0 %v322
        %386 = vmatpush1.msra.mxu0 %v321
        %387 = vmatprep.subr.mxu0 %v324
        %388 = vmatpush1.msra.mxu0 %v323
        %389 = vmatprep.subr.mxu0 %v326
        %390 = vmatpush1.msra.mxu0 %v325
        %391 = vmatprep.subr.mxu0 %v328
        %392 = vmatpush1.msra.mxu0 %v327
        %393 = vmatprep.subr.mxu0 %v330
        %394 = vmatpush1.msra.mxu0 %v329
        %395 = vmatprep.subr.mxu0 %v332
        %396 = vmatpush1.msra.mxu0 %v331
        %397 = vmatprep.subr.mxu0 %v334
        %398 = vmatpush1.msra.mxu0 %v333
        %399 = vmatprep.subr.mxu0 %v336
        %400 = vmatpush1.msra.mxu0 %v335
        %401 = vmatprep.mubr.f32.mxu0 %v272
        %402 = vmatmul.mubr.f32.gmra.mrb[0].mxu0 %v271
        %v403 = vpop.f32.mrb[0].mxu0
        %v404 = vadd.f32 0.0, %v403
        %v405 = vpop.f32.mrb[0].mxu0
        %v406 = vadd.f32 0.0, %v405
        %407 = vdwg.mxu0
        %v408 = vadd.f32 %v269, %v404
        %v409 = vadd.f32 %v270, %v406
        %410 = vst [vmem:[%s253] sm:$0xff] %v408
        %411 = vst [vmem:[%s253 + $0x8] sm:$0xff] %v409
        // Predicated region
        $region45: #{tpu_custom_call.1} parent=31 // pred_check
          %p412 = pneg %p263
        $region46: #{tpu_custom_call.1} parent=31 // pred_check_branch
          %414 = sbr.rel (%p412) target = $region48
        $region47: #{tpu_custom_call.1} parent=31 // pred_region
          %v415 = vld [vmem:[%s253] sm:$0xff]
          %v416 = vld [vmem:[%s253 + $0x8] sm:$0xff]
          %v417 = vld [vmem:[%s260] sm:$0x3]
          %v419 = vlaneseq
          %v420 = vshrl.u32 %v419, 7
          %v421 = vsub.s32 0, %v420
          %v422 = vrot.slane %v417, %v421
          %v423 = vlaneseq
          %v424 = vshrl.u32 %v423, 7
          %v425 = vsub.s32 1, %v424
          %v426 = vrot.slane %v417, %v425
          %v429 = vadd.f32 %v415, %v422
          %v430 = vadd.f32 %v416, %v426
          %v431 = vmax.f32 %v429, 0.0
          %v432 = vmax.f32 %v430, 0.0
          %433 = vst [vmem:[%s253] sm:$0xff] %v431
          %434 = vst [vmem:[%s253 + $0x8] sm:$0xff] %v432
        $region48: #{tpu_custom_call.1} parent=31 // pred_fallthru
          _
        %s435 = sand.u32 %s132, 1
        %s436 = scalar_lea.sflag [#allocation4], %s435
        %s437 = sand.u32 %s132, 1
        %s438 = smul.addr %s437, 16
        %s439 = scalar_lea.vmem [#allocation7], %s438
        // Predicated region
        $region49: #{tpu_custom_call.1} parent=31 // pred_check
          %p440 = pneg %p142
        $region50: #{tpu_custom_call.1} parent=31 // pred_check_branch
          %442 = sbr.rel (%p440) target = $region52
        $region51: #{tpu_custom_call.1} parent=31 // pred_region
          %s443 = smul.u32 2, %s27
          %s445 = ssub.s32 256, 256
          %446 = vsyncadd %s436, %s445
          %s447 = smul.addr %s26, 2
          %s448 = sadd.s32 %s443, %s447
          %s449 = smul.addr %s448, 128
          %s450 = scalar_lea.hbm %s3, %s449
          %s452 = sshll.u32 %s439, 4
          %s453 = int_to_ptr.vmem [resolvable:$true] %s452
          %455 = dma.vmem_to_hbm [thread:$0]  %s453, 256, %s450, %s436
        $region52: #{tpu_custom_call.1} parent=31 // pred_fallthru
          _
      $region32: #{tpu_custom_call.1} parent=5 // pred_fallthru
        _
      %p456 = scmp.le.s32.totalorder 2, %s16
      // Predicated region
      $region53: #{tpu_custom_call.1} parent=5 // pred_check
        %p457 = pneg %p456
      $region54: #{tpu_custom_call.1} parent=5 // pred_check_branch
        %459 = sbr.rel (%p457) target = $region56
      $region55: #{tpu_custom_call.1} parent=5 // pred_region
        %s460 = ssub.s32 %s16, 2
        // Predicated region
        $region57: #{tpu_custom_call.1} parent=55 // pred_check
          %p461 = pneg %p148
        $region58: #{tpu_custom_call.1} parent=55 // pred_check_branch
          %463 = sbr.rel (%p461) target = $region60
        $region59: #{tpu_custom_call.1} parent=55 // pred_region
          %s464 = sand.u32 %s133, 1
          %s465 = scalar_lea.sflag [#allocation4], %s464
          %s466 = sand.u32 %s133, 1
          %s467 = smul.addr %s466, 16
          %s468 = scalar_lea.vmem [#allocation7], %s467
          %469 = dma.done %s465, 256
        $region60: #{tpu_custom_call.1} parent=55 // pred_fallthru
          _
      $region56: #{tpu_custom_call.1} parent=5 // pred_fallthru
        _
    $region6: #{tpu_custom_call.1} parent=1 // loop_footer
      %s20 = sadd.s32 1, %s16
    $region7: #{tpu_custom_call.1} parent=1 // loop_footer_branch
      %15 = sbr.rel target = $region3
    $region8: #{tpu_custom_call.1} parent=1 // loop_exit
      _
    %470 = vsyncpa [#allocation3], 1
    %s471 = scalar_lea.sflag [#allocation3], 1
    %472 = vsyncpa %s471, 1
    %473 = vsyncpa [#allocation6], 1
    %474 = vsyncpa [#allocation4], 1
    %s475 = scalar_lea.sflag [#allocation4], 1
    %476 = vsyncpa %s475, 1

</llo_original>
